<compile_context>
chip_gen: v7x
topology: tpu7x:2x2x1
jax: 0.10.0
libtpu: 0.0.40
codegen_flags: <defaults>
</compile_context>

<pallas_src>
import functools
import math

import jax
import jax.numpy as jnp
from jax.experimental import pallas as pl
from jax.experimental.pallas import tpu as pltpu


# Rows of the packed (NUM_VEC, P) LayerNorm/bias block.
(_LN1_G, _LN1_B, _BQ, _BK, _BV, _BO, _LN2_G, _LN2_B, _B1, _B2) = range(10)
NUM_VEC = 10


def _round_up(v, m):
    return ((v + m - 1) // m) * m


def _layer_norm(x, gamma, beta, eps=1e-5):
    mu = jnp.mean(x, axis=-1, keepdims=True)
    var = jnp.mean((x - mu) ** 2, axis=-1, keepdims=True)
    return (x - mu) * jax.lax.rsqrt(var + eps) * gamma + beta


# ----------------------------- kernel A: LN1 + QKV projection -----------------------------

def qkv_proj_kernel(vec_ref, x_ref, wq_ref, wk_ref, wv_ref,
                    q_ref, k_ref, v_ref, *, heads, scale):
    D = wq_ref.shape[0]
    hd = D // heads
    ts = x_ref.shape[1]
    cdt = wq_ref.dtype                      # MXU input dtype (bf16); accumulation f32

    x = x_ref[0].astype(jnp.float32)                                   # (ts, D)
    xn = _layer_norm(x, vec_ref[_LN1_G, :D], vec_ref[_LN1_B, :D]).astype(cdt)

    q = (jnp.dot(xn, wq_ref[...], preferred_element_type=jnp.float32)
         + vec_ref[_BQ, :D]) * scale        # fold torch's dim**-0.5 score scale into Q
    k = jnp.dot(xn, wk_ref[...], preferred_element_type=jnp.float32) + vec_ref[_BK, :D]
    v = jnp.dot(xn, wv_ref[...], preferred_element_type=jnp.float32) + vec_ref[_BV, :D]

    def split_heads_t(a):                   # (ts, D) -> (heads, hd, ts)
        return a.T.reshape(heads, hd, ts)   # 2-D transpose + leading-dim split

    # K stored (heads, hd, N): contraction dim on sublanes -> lane-dense scores later.
    k_ref[0] = split_heads_t(k).astype(cdt)
    # Q / V stored (heads, N, hd): natural orientation for QK^T LHS and PV RHS.
    q_ref[0] = jnp.swapaxes(split_heads_t(q), 1, 2).astype(cdt)
    v_ref[0] = jnp.swapaxes(split_heads_t(v), 1, 2).astype(cdt)


# ----------------------- kernel B: attention (online softmax) + MLP -----------------------

def attn_mlp_kernel(vec_ref, x_ref, q_ref, k_ref, v_ref, wo_ref, w1_ref, w2_ref,
                    o_ref, m_scr, l_scr, acc_scr, *, heads):
    D = wo_ref.shape[0]
    H = w1_ref.shape[1]
    cdt = wo_ref.dtype
    ki = pl.program_id(2)

    @pl.when(ki == 0)
    def _():
        m_scr[...] = jnp.full(m_scr.shape, -jnp.inf, m_scr.dtype)
        l_scr[...] = jnp.zeros(l_scr.shape, l_scr.dtype)
        acc_scr[...] = jnp.zeros(acc_scr.shape, acc_scr.dtype)

    # ---- online-softmax step over this K/V tile ----
    # (heads, tq, hd) x (heads, hd, tk) -> (heads, tq, tk); lane-dense output.
    s = jnp.einsum('hqd,hdk->hqk', q_ref[0], k_ref[0],
                   preferred_element_type=jnp.float32)
    m_prev = m_scr[...]
    m_new = jnp.maximum(m_prev, jnp.max(s, axis=-1, keepdims=True))
    alpha = jnp.exp(m_prev - m_new)
    p = jnp.exp(s - m_new)
    l_scr[...] = alpha * l_scr[...] + jnp.sum(p, axis=-1, keepdims=True)
    acc_scr[...] = alpha * acc_scr[...] + jnp.einsum(
        'hqk,hkd->hqd', p.astype(cdt), v_ref[0],
        preferred_element_type=jnp.float32)
    m_scr[...] = m_new

    # ---- finalize: Wo projection, residual, LN2 + MLP, residual ----
    @pl.when(ki == pl.num_programs(2) - 1)
    def _():
        ctx = acc_scr[...] * pl.reciprocal(l_scr[...], approx=True)    # (heads, tq, hd)
        # merge heads once per q-tile: (heads, tq, hd) -> (tq, D)
        ctx_t = jnp.swapaxes(ctx, 1, 2)                                # (heads, hd, tq)
        ctx2 = ctx_t.reshape(D, ctx_t.shape[-1]).T                     # (tq, D)

        attn = jnp.dot(ctx2.astype(cdt), wo_ref[...],
                       preferred_element_type=jnp.float32) + vec_ref[_BO, :D]
        x1 = x_ref[0].astype(jnp.float32) + attn                       # residual 1

        xn2 = _layer_norm(x1, vec_ref[_LN2_G, :D], vec_ref[_LN2_B, :D]).astype(cdt)
        h1 = jnp.dot(xn2, w1_ref[...], preferred_element_type=jnp.float32) + vec_ref[_B1, :H]
        h1 = jax.nn.gelu(h1, approximate=True)      # tanh GELU (EUP path)
        h2 = jnp.dot(h1.astype(cdt), w2_ref[...],
                     preferred_element_type=jnp.float32) + vec_ref[_B2, :D]

        o_ref[0] = (x1 + h2).astype(o_ref.dtype)                       # residual 2


# ----------------------------- VMEM budget / tile selection -----------------------------

def _vmem_capacity_bytes():
    try:
        return int(pltpu.get_tpu_info().vmem_capacity_bytes)
    except Exception:
        return 64 * 1024 * 1024          # conservative (v7x per-TC)


def _vmem_limit_bytes():
    return int(min(_vmem_capacity_bytes() * 0.9, 100 * 1024 * 1024))


def _attn_vmem_bytes(tq, tk, D, H, heads):
    """Rough peak-VMEM model for the fused attention+MLP kernel."""
    hd = D // heads
    bf, f32 = 2, 4
    rl = lambda v: _round_up(v, 128)
    rs = lambda v: _round_up(max(v, 1), 8)
    P = rl(max(D, H))
    weights = 2 * bf * (D * rl(D) + D * rl(H) + H * rl(D))        # wo, w1, w2 (x2 buffers)
    vec = 2 * f32 * _round_up(NUM_VEC, 8) * P
    xio = 2 * f32 * rs(tq) * rl(D) * 2                            # x in + out blocks
    qblk = 2 * bf * heads * rs(tq) * rl(hd)
    kblk = 2 * bf * heads * rs(hd) * rl(tk)
    vblk = 2 * bf * heads * rs(tk) * rl(hd)
    scr = 2 * f32 * heads * rs(tq) * 128 + f32 * heads * rs(tq) * rl(hd)   # m, l, acc
    tmp = (heads * rs(tq) * rl(tk) * (f32 + bf)                   # scores f32 + p bf16
           + heads * rs(tq) * rl(hd) * f32                        # pv partial
           + rs(tq) * rl(H) * f32 * 2                             # mlp hidden
           + rs(tq) * rl(D) * f32 * 4)                            # LN / residual temps
    return weights + vec + xio + qblk + kblk + vblk + scr + tmp


def _select_tiles(N, D, H, heads):
    """Pick the largest (q_tile, k_tile) that fits ~80% of this chip's VMEM."""
    budget = int(_vmem_capacity_bytes() * 0.8)
    if N % 128 == 0:
        q_cands = [c for c in (256, 128) if N % c == 0] or [N]
        k_cands = []
        for c in (N, 4096, 2048, 1024, 512, 256, 128):
            if c <= N and N % c == 0 and c not in k_cands:
                k_cands.append(c)
    else:
        q_cands, k_cands = [N], [N]
    for tq in q_cands:
        for tk in k_cands:
            if _attn_vmem_bytes(tq, tk, D, H, heads) <= budget:
                return tq, tk
    return q_cands[-1], k_cands[-1]


def _proj_seq_tile(N):
    for c in (512, 256, 128):
        if N % c == 0:
            return c
    return N


# --------------------------------------- wrapper ---------------------------------------

def _run_layer(x, layer, heads):
    vec, wq, wk, wv, wo, w1, w2 = layer
    B, N, D = x.shape
    assert D % heads == 0, "dim must be divisible by heads"
    H = w1.shape[1]
    hd = D // heads
    cdt = wq.dtype
    scale = float(D) ** -0.5            # matches torch: self.scale = dim ** (-0.5)
    vlim = _vmem_limit_bytes()

    # ---- kernel A: LN1 + Q/K/V projection, head-major outputs in HBM ----
    ts = _proj_seq_tile(N)
    q_hm, k_hm, v_hm = pl.pallas_call(
        functools.partial(qkv_proj_kernel, heads=heads, scale=scale),
        out_shape=(jax.ShapeDtypeStruct((B, heads, N, hd), cdt),   # Q
                   jax.ShapeDtypeStruct((B, heads, hd, N), cdt),   # K (transposed)
                   jax.ShapeDtypeStruct((B, heads, N, hd), cdt)),  # V
        grid=(B, N // ts),
        in_specs=[pl.BlockSpec(vec.shape, lambda b, s: (0, 0)),
                  pl.BlockSpec((1, ts, D), lambda b, s: (b, s, 0)),
                  pl.BlockSpec((D, D), lambda b, s: (0, 0)),
                  pl.BlockSpec((D, D), lambda b, s: (0, 0)),
                  pl.BlockSpec((D, D), lambda b, s: (0, 0))],
        out_specs=(pl.BlockSpec((1, heads, ts, hd), lambda b, s: (b, 0, s, 0)),
                   pl.BlockSpec((1, heads, hd, ts), lambda b, s: (b, 0, 0, s)),
                   pl.BlockSpec((1, heads, ts, hd), lambda b, s: (b, 0, s, 0))),
        compiler_params=pltpu.CompilerParams(
            dimension_semantics=("parallel", "parallel"),
            vmem_limit_bytes=vlim),
    )(vec, x, wq, wk, wv)

    # ---- kernel B: attention (online softmax over k tiles) + MLP ----
    tq, tk = _select_tiles(N, D, H, heads)
    out = pl.pallas_call(
        functools.partial(attn_mlp_kernel, heads=heads),
        out_shape=jax.ShapeDtypeStruct((B, N, D), x.dtype),
        grid=(B, N // tq, N // tk),
        in_specs=[pl.BlockSpec(vec.shape, lambda b, q, k: (0, 0)),
                  pl.BlockSpec((1, tq, D), lambda b, q, k: (b, q, 0)),
                  pl.BlockSpec((1, heads, tq, hd), lambda b, q, k: (b, 0, q, 0)),
                  pl.BlockSpec((1, heads, hd, tk), lambda b, q, k: (b, 0, 0, k)),
                  pl.BlockSpec((1, heads, tk, hd), lambda b, q, k: (b, 0, k, 0)),
                  pl.BlockSpec((D, D), lambda b, q, k: (0, 0)),
                  pl.BlockSpec((D, H), lambda b, q, k: (0, 0)),
                  pl.BlockSpec((H, D), lambda b, q, k: (0, 0))],
        out_specs=pl.BlockSpec((1, tq, D), lambda b, q, k: (b, q, 0)),
        scratch_shapes=[pltpu.VMEM((heads, tq, 1), jnp.float32),   # running max
                        pltpu.VMEM((heads, tq, 1), jnp.float32),   # running sum
                        pltpu.VMEM((heads, tq, hd), jnp.float32)], # accumulator
        compiler_params=pltpu.CompilerParams(
            dimension_semantics=("parallel", "parallel", "arbitrary"),
            vmem_limit_bytes=vlim),
    )(vec, x, q_hm, k_hm, v_hm, wo, w1, w2)
    return out


def transformer_forward(x, prepared_params, heads):
    """Full Transformer stack: two fused Pallas kernels per layer."""
    for layer in prepared_params:
        x = _run_layer(x, layer, heads)
    return x


# ----------------------------- parameter handling -----------------------------

def xavier_uniform(key, shape):
    fan_out, fan_in = shape
    bound = math.sqrt(6.0 / (fan_in + fan_out))
    return jax.random.uniform(key, shape, jnp.float32, -bound, bound)


def init_params(key, dim, depth, heads, mlp_dim):
    """Parameters in PyTorch nn.Linear layout: weight = (out_features, in_features)."""
    params = []
    for _ in range(depth):
        keys = jax.random.split(key, 7)
        key = keys[0]
        layer = [
            jnp.ones((1, dim), jnp.float32),                     # LN1 gamma
            jnp.zeros((1, dim), jnp.float32),                    # LN1 beta
            xavier_uniform(keys[1], (3 * dim, dim)),             # to_qkv weight
            jnp.zeros((1, 3 * dim), jnp.float32),                # to_qkv bias
            xavier_uniform(keys[2], (dim, dim)),                 # attn nn1 weight
            jnp.zeros((1, dim), jnp.float32),                    # attn nn1 bias
            jnp.ones((1, dim), jnp.float32),                     # LN2 gamma
            jnp.zeros((1, dim), jnp.float32),                    # LN2 beta
            xavier_uniform(keys[3], (mlp_dim, dim)),             # mlp nn1 weight
            1e-6 * jax.random.normal(keys[4], (1, mlp_dim), jnp.float32),  # mlp nn1 bias
            xavier_uniform(keys[5], (dim, mlp_dim)),             # mlp nn2 weight
            1e-6 * jax.random.normal(keys[6], (1, dim), jnp.float32),      # mlp nn2 bias
        ]
        params.append(layer)
    return params


def prepare_params(raw_params, matmul_dtype=jnp.bfloat16):
    """Wrapper-side (one-time) prep: split to_qkv, transpose every weight to
    (in_dim, out_dim), cast matmul weights to bf16, and pack the ten LN/bias
    vectors into one (NUM_VEC, P) f32 block (one DMA per grid, f32 math)."""
    prepared = []
    for (g1, be1, wqkv, bqkv, wo, bo, g2, be2, w1, b1, w2, b2) in raw_params:
        D = wo.shape[0]
        H = w1.shape[0]
        P = _round_up(max(D, H), 128)

        def pad(v):
            v = jnp.reshape(v, (-1,)).astype(jnp.float32)
            return jnp.pad(v, (0, P - v.shape[0]))

        vec = jnp.stack([pad(g1), pad(be1),
                         pad(bqkv[:, :D]), pad(bqkv[:, D:2 * D]), pad(bqkv[:, 2 * D:]),
                         pad(bo), pad(g2), pad(be2), pad(b1), pad(b2)], axis=0)
        prepared.append((
            vec,                                        # (NUM_VEC, P) f32
            wqkv[:D].T.astype(matmul_dtype),            # Wq^T (D, D)
            wqkv[D:2 * D].T.astype(matmul_dtype),       # Wk^T (D, D)
            wqkv[2 * D:].T.astype(matmul_dtype),        # Wv^T (D, D)
            wo.T.astype(matmul_dtype),                  # (D, D)
            w1.T.astype(matmul_dtype),                  # (D, H)
            w2.T.astype(matmul_dtype),                  # (H, D)
        ))
    return prepared


# ----------------------------- pure-JAX reference (for validation) -----------------------------

def _ref_layer_norm(x, g, b, eps=1e-5):
    mu = x.mean(-1, keepdims=True)
    var = ((x - mu) ** 2).mean(-1, keepdims=True)
    return (x - mu) / jnp.sqrt(var + eps) * g + b


def reference_forward(x, raw_params, heads):
    for (g1, be1, wqkv, bqkv, wo, bo, g2, be2, w1, b1, w2, b2) in raw_params:
        B, N, D = x.shape
        hd = D // heads
        xn = _ref_layer_norm(x, g1[0], be1[0])
        qkv = xn @ wqkv.T + bqkv[0]
        q, k, v = qkv[..., :D], qkv[..., D:2 * D], qkv[..., 2 * D:]
        split = lambda a: a.reshape(B, N, heads, hd).transpose(0, 2, 1, 3)
        q, k, v = split(q), split(k), split(v)
        dots = jnp.einsum('bhid,bhjd->bhij', q, k) * (float(D) ** -0.5)
        attn = jax.nn.softmax(dots, axis=-1)
        ctx = jnp.einsum('bhij,bhjd->bhid', attn, v)
        ctx = ctx.transpose(0, 2, 1, 3).reshape(B, N, D)
        x = x + (ctx @ wo.T + bo[0])
        xn2 = _ref_layer_norm(x, g2[0], be2[0])
        h = jax.nn.gelu(xn2 @ w1.T + b1[0], approximate=True)
        x = x + (h @ w2.T + b2[0])
    return x


if __name__ == "__main__":
    # Small shapes consistent with the module: batch=2, seq=8, dim=32.
    dim, depth, heads, mlp_dim = 32, 2, 4, 64
    B, N = 2, 8

    key = jax.random.PRNGKey(0)
    kx, kp = jax.random.split(key)
    x = jax.random.normal(kx, (B, N, dim), jnp.float32)

    raw_params = init_params(kp, dim, depth, heads, mlp_dim)
    params = prepare_params(raw_params, matmul_dtype=jnp.bfloat16)

    out = transformer_forward(x, params, heads)
    out = jax.block_until_ready(out)
    assert out.shape == (B, N, dim)
    assert bool(jnp.all(jnp.isfinite(out)))

    ref = reference_forward(x, raw_params, heads)
    err = float(jnp.max(jnp.abs(out - ref)))
    assert err < 0.35, f"kernel/reference mismatch: max|diff|={err}"

    print("KERNEL_OK")
</pallas_src>

<mosaic_0001>
module attributes {stable_mosaic.version = 11 : i64} {
  func.func @qkv_proj_kernel(%arg0: i32, %arg1: i32, %arg2: memref<10x128xf32, #tpu.memory_space<vmem>>, %arg3: memref<1x8x32xf32, #tpu.memory_space<vmem>>, %arg4: memref<32x32xbf16, #tpu.memory_space<vmem>>, %arg5: memref<32x32xbf16, #tpu.memory_space<vmem>>, %arg6: memref<32x32xbf16, #tpu.memory_space<vmem>>, %arg7: memref<1x4x8x8xbf16, #tpu.memory_space<vmem>>, %arg8: memref<1x4x8x8xbf16, #tpu.memory_space<vmem>>, %arg9: memref<1x4x8x8xbf16, #tpu.memory_space<vmem>>) attributes {dimension_semantics = [#tpu.dimension_semantics<parallel>, #tpu.dimension_semantics<parallel>], iteration_bounds = array<i64: 2, 1>, scalar_prefetch = 0 : i64, scratch_operands = 0 : i64, tpu.core_type = #tpu.core_type<tc>, window_params = [{pipeline_mode = #tpu.pipeline_mode<synchronous>, transform_indices = @transform_0, window_bounds = array<i64: 10, 128>}, {transform_indices = @transform_1, window_bounds = array<i64: 1, 8, 32>}, {pipeline_mode = #tpu.pipeline_mode<synchronous>, transform_indices = @transform_2, window_bounds = array<i64: 32, 32>}, {pipeline_mode = #tpu.pipeline_mode<synchronous>, transform_indices = @transform_3, window_bounds = array<i64: 32, 32>}, {pipeline_mode = #tpu.pipeline_mode<synchronous>, transform_indices = @transform_4, window_bounds = array<i64: 32, 32>}, {transform_indices = @transform_5, window_bounds = array<i64: 1, 4, 8, 8>}, {transform_indices = @transform_6, window_bounds = array<i64: 1, 4, 8, 8>}, {transform_indices = @transform_7, window_bounds = array<i64: 1, 4, 8, 8>}]} {
    %c0 = arith.constant 0 : index
    %c0_0 = arith.constant 0 : index
    %c0_1 = arith.constant 0 : index
    %0 = vector.load %arg3[%c0, %c0_0, %c0_1] : memref<1x8x32xf32, #tpu.memory_space<vmem>>, vector<1x8x32xf32>
    %1 = vector.shape_cast %0 : vector<1x8x32xf32> to vector<8x32xf32>
    %c0_2 = arith.constant 0 : index
    %c0_3 = arith.constant 0 : index
    %2 = vector.load %arg2[%c0_2, %c0_3] : memref<10x128xf32, #tpu.memory_space<vmem>>, vector<1x32xf32>
    %3 = vector.shape_cast %2 : vector<1x32xf32> to vector<32xf32>
    %c1 = arith.constant 1 : index
    %c0_4 = arith.constant 0 : index
    %4 = vector.load %arg2[%c1, %c0_4] : memref<10x128xf32, #tpu.memory_space<vmem>>, vector<1x32xf32>
    %5 = vector.shape_cast %4 : vector<1x32xf32> to vector<32xf32>
    %cst = arith.constant dense<0.000000e+00> : vector<8xf32>
    %6 = vector.multi_reduction <add>, %1, %cst [1] : vector<8x32xf32> to vector<8xf32>
    %7 = vector.shape_cast %6 : vector<8xf32> to vector<8x1xf32>
    %cst_5 = arith.constant 3.200000e+01 : f32
    %8 = vector.broadcast %cst_5 : f32 to vector<8x1xf32>
    %9 = arith.divf %7, %8 : vector<8x1xf32>
    %10 = vector.broadcast %9 : vector<8x1xf32> to vector<8x32xf32>
    %11 = arith.subf %1, %10 : vector<8x32xf32>
    %12 = arith.mulf %11, %11 : vector<8x32xf32>
    %cst_6 = arith.constant dense<0.000000e+00> : vector<8xf32>
    %13 = vector.multi_reduction <add>, %12, %cst_6 [1] : vector<8x32xf32> to vector<8xf32>
    %14 = vector.shape_cast %13 : vector<8xf32> to vector<8x1xf32>
    %cst_7 = arith.constant 3.200000e+01 : f32
    %15 = vector.broadcast %cst_7 : f32 to vector<8x1xf32>
    %16 = arith.divf %14, %15 : vector<8x1xf32>
    %17 = vector.broadcast %9 : vector<8x1xf32> to vector<8x32xf32>
    %18 = arith.subf %1, %17 : vector<8x32xf32>
    %cst_8 = arith.constant 9.99999974E-6 : f32
    %19 = vector.broadcast %cst_8 : f32 to vector<8x1xf32>
    %20 = arith.addf %16, %19 : vector<8x1xf32>
    %21 = math.rsqrt %20 : vector<8x1xf32>
    %22 = vector.broadcast %21 : vector<8x1xf32> to vector<8x32xf32>
    %23 = arith.mulf %18, %22 : vector<8x32xf32>
    %24 = vector.shape_cast %3 : vector<32xf32> to vector<1x32xf32>
    %25 = vector.broadcast %24 : vector<1x32xf32> to vector<8x32xf32>
    %26 = arith.mulf %23, %25 : vector<8x32xf32>
    %27 = vector.shape_cast %5 : vector<32xf32> to vector<1x32xf32>
    %28 = vector.broadcast %27 : vector<1x32xf32> to vector<8x32xf32>
    %29 = arith.addf %26, %28 : vector<8x32xf32>
    %30 = arith.truncf %29 : vector<8x32xf32> to vector<8x32xbf16>
    %c0_9 = arith.constant 0 : index
    %c0_10 = arith.constant 0 : index
    %31 = vector.load %arg4[%c0_9, %c0_10] : memref<32x32xbf16, #tpu.memory_space<vmem>>, vector<32x32xbf16>
    %cst_11 = arith.constant dense<0.000000e+00> : vector<8x32xf32>
    %32 = tpu.matmul %30, %31, %cst_11 {dimension_numbers = #tpu.dot_dimension_numbers<[1], [0], [0], [1], [0, 0, 1, 1], [], []>} : vector<8x32xbf16>, vector<32x32xbf16>, vector<8x32xf32> -> vector<8x32xf32>
    %c2 = arith.constant 2 : index
    %c0_12 = arith.constant 0 : index
    %33 = vector.load %arg2[%c2, %c0_12] : memref<10x128xf32, #tpu.memory_space<vmem>>, vector<1x32xf32>
    %34 = vector.shape_cast %33 : vector<1x32xf32> to vector<32xf32>
    %35 = vector.shape_cast %34 : vector<32xf32> to vector<1x32xf32>
    %36 = vector.broadcast %35 : vector<1x32xf32> to vector<8x32xf32>
    %37 = arith.addf %32, %36 : vector<8x32xf32>
    %cst_13 = arith.constant 0.176776692 : f32
    %38 = vector.broadcast %cst_13 : f32 to vector<8x32xf32>
    %39 = arith.mulf %37, %38 : vector<8x32xf32>
    %c0_14 = arith.constant 0 : index
    %c0_15 = arith.constant 0 : index
    %40 = vector.load %arg5[%c0_14, %c0_15] : memref<32x32xbf16, #tpu.memory_space<vmem>>, vector<32x32xbf16>
    %cst_16 = arith.constant dense<0.000000e+00> : vector<8x32xf32>
    %41 = tpu.matmul %30, %40, %cst_16 {dimension_numbers = #tpu.dot_dimension_numbers<[1], [0], [0], [1], [0, 0, 1, 1], [], []>} : vector<8x32xbf16>, vector<32x32xbf16>, vector<8x32xf32> -> vector<8x32xf32>
    %c3 = arith.constant 3 : index
    %c0_17 = arith.constant 0 : index
    %42 = vector.load %arg2[%c3, %c0_17] : memref<10x128xf32, #tpu.memory_space<vmem>>, vector<1x32xf32>
    %43 = vector.shape_cast %42 : vector<1x32xf32> to vector<32xf32>
    %44 = vector.shape_cast %43 : vector<32xf32> to vector<1x32xf32>
    %45 = vector.broadcast %44 : vector<1x32xf32> to vector<8x32xf32>
    %46 = arith.addf %41, %45 : vector<8x32xf32>
    %c0_18 = arith.constant 0 : index
    %c0_19 = arith.constant 0 : index
    %47 = vector.load %arg6[%c0_18, %c0_19] : memref<32x32xbf16, #tpu.memory_space<vmem>>, vector<32x32xbf16>
    %cst_20 = arith.constant dense<0.000000e+00> : vector<8x32xf32>
    %48 = tpu.matmul %30, %47, %cst_20 {dimension_numbers = #tpu.dot_dimension_numbers<[1], [0], [0], [1], [0, 0, 1, 1], [], []>} : vector<8x32xbf16>, vector<32x32xbf16>, vector<8x32xf32> -> vector<8x32xf32>
    %c4 = arith.constant 4 : index
    %c0_21 = arith.constant 0 : index
    %49 = vector.load %arg2[%c4, %c0_21] : memref<10x128xf32, #tpu.memory_space<vmem>>, vector<1x32xf32>
    %50 = vector.shape_cast %49 : vector<1x32xf32> to vector<32xf32>
    %51 = vector.shape_cast %50 : vector<32xf32> to vector<1x32xf32>
    %52 = vector.broadcast %51 : vector<1x32xf32> to vector<8x32xf32>
    %53 = arith.addf %48, %52 : vector<8x32xf32>
    %54 = tpu.transpose %46, [1, 0] : vector<8x32xf32> -> vector<32x8xf32>
    %55 = vector.shape_cast %54 : vector<32x8xf32> to vector<4x8x8xf32>
    %56 = arith.truncf %55 : vector<4x8x8xf32> to vector<4x8x8xbf16>
    %c0_22 = arith.constant 0 : index
    %c0_23 = arith.constant 0 : index
    %c0_24 = arith.constant 0 : index
    %c0_25 = arith.constant 0 : index
    %57 = vector.load %arg8[%c0_22, %c0_23, %c0_24, %c0_25] : memref<1x4x8x8xbf16, #tpu.memory_space<vmem>>, vector<1x4x8x8xbf16>
    %58 = vector.shape_cast %57 : vector<1x4x8x8xbf16> to vector<4x8x8xbf16>
    %59 = vector.shape_cast %56 : vector<4x8x8xbf16> to vector<1x4x8x8xbf16>
    tpu.vector_store %arg8[%c0_22, %c0_23, %c0_24, %c0_25], %59 {strides = array<i32>} : memref<1x4x8x8xbf16, #tpu.memory_space<vmem>>, vector<1x4x8x8xbf16>,
    %60 = tpu.transpose %39, [1, 0] : vector<8x32xf32> -> vector<32x8xf32>
    %61 = vector.shape_cast %60 : vector<32x8xf32> to vector<4x8x8xf32>
    %62 = tpu.transpose %61, [0, 2, 1] : vector<4x8x8xf32> -> vector<4x8x8xf32>
    %63 = arith.truncf %62 : vector<4x8x8xf32> to vector<4x8x8xbf16>
    %c0_26 = arith.constant 0 : index
    %c0_27 = arith.constant 0 : index
    %c0_28 = arith.constant 0 : index
    %c0_29 = arith.constant 0 : index
    %64 = vector.load %arg7[%c0_26, %c0_27, %c0_28, %c0_29] : memref<1x4x8x8xbf16, #tpu.memory_space<vmem>>, vector<1x4x8x8xbf16>
    %65 = vector.shape_cast %64 : vector<1x4x8x8xbf16> to vector<4x8x8xbf16>
    %66 = vector.shape_cast %63 : vector<4x8x8xbf16> to vector<1x4x8x8xbf16>
    tpu.vector_store %arg7[%c0_26, %c0_27, %c0_28, %c0_29], %66 {strides = array<i32>} : memref<1x4x8x8xbf16, #tpu.memory_space<vmem>>, vector<1x4x8x8xbf16>,
    %67 = tpu.transpose %53, [1, 0] : vector<8x32xf32> -> vector<32x8xf32>
    %68 = vector.shape_cast %67 : vector<32x8xf32> to vector<4x8x8xf32>
    %69 = tpu.transpose %68, [0, 2, 1] : vector<4x8x8xf32> -> vector<4x8x8xf32>
    %70 = arith.truncf %69 : vector<4x8x8xf32> to vector<4x8x8xbf16>
    %c0_30 = arith.constant 0 : index
    %c0_31 = arith.constant 0 : index
    %c0_32 = arith.constant 0 : index
    %c0_33 = arith.constant 0 : index
    %71 = vector.load %arg9[%c0_30, %c0_31, %c0_32, %c0_33] : memref<1x4x8x8xbf16, #tpu.memory_space<vmem>>, vector<1x4x8x8xbf16>
    %72 = vector.shape_cast %71 : vector<1x4x8x8xbf16> to vector<4x8x8xbf16>
    %73 = vector.shape_cast %70 : vector<4x8x8xbf16> to vector<1x4x8x8xbf16>
    tpu.vector_store %arg9[%c0_30, %c0_31, %c0_32, %c0_33], %73 {strides = array<i32>} : memref<1x4x8x8xbf16, #tpu.memory_space<vmem>>, vector<1x4x8x8xbf16>,
    return
  }
  func.func @transform_0(%arg0: i32, %arg1: i32) -> (i32, i32) {
    %c0_i32 = arith.constant 0 : i32
    %c0_i32_0 = arith.constant 0 : i32
    %c0_i32_1 = arith.constant 0 : i32
    return %c0_i32, %c0_i32_0 : i32, i32
  }
  func.func @transform_1(%arg0: i32, %arg1: i32) -> (i32, i32, i32) {
    %c0_i32 = arith.constant 0 : i32
    %c0_i32_0 = arith.constant 0 : i32
    return %arg0, %arg1, %c0_i32 : i32, i32, i32
  }
  func.func @transform_2(%arg0: i32, %arg1: i32) -> (i32, i32) {
    %c0_i32 = arith.constant 0 : i32
    %c0_i32_0 = arith.constant 0 : i32
    %c0_i32_1 = arith.constant 0 : i32
    return %c0_i32, %c0_i32_0 : i32, i32
  }
  func.func @transform_3(%arg0: i32, %arg1: i32) -> (i32, i32) {
    %c0_i32 = arith.constant 0 : i32
    %c0_i32_0 = arith.constant 0 : i32
    %c0_i32_1 = arith.constant 0 : i32
    return %c0_i32, %c0_i32_0 : i32, i32
  }
  func.func @transform_4(%arg0: i32, %arg1: i32) -> (i32, i32) {
    %c0_i32 = arith.constant 0 : i32
    %c0_i32_0 = arith.constant 0 : i32
    %c0_i32_1 = arith.constant 0 : i32
    return %c0_i32, %c0_i32_0 : i32, i32
  }
  func.func @transform_5(%arg0: i32, %arg1: i32) -> (i32, i32, i32, i32) {
    %c0_i32 = arith.constant 0 : i32
    %c0_i32_0 = arith.constant 0 : i32
    %c0_i32_1 = arith.constant 0 : i32
    return %arg0, %c0_i32, %arg1, %c0_i32_0 : i32, i32, i32, i32
  }
  func.func @transform_6(%arg0: i32, %arg1: i32) -> (i32, i32, i32, i32) {
    %c0_i32 = arith.constant 0 : i32
    %c0_i32_0 = arith.constant 0 : i32
    %c0_i32_1 = arith.constant 0 : i32
    return %arg0, %c0_i32, %c0_i32_0, %arg1 : i32, i32, i32, i32
  }
  func.func @transform_7(%arg0: i32, %arg1: i32) -> (i32, i32, i32, i32) {
    %c0_i32 = arith.constant 0 : i32
    %c0_i32_0 = arith.constant 0 : i32
    %c0_i32_1 = arith.constant 0 : i32
    return %arg0, %c0_i32, %arg1, %c0_i32_0 : i32, i32, i32, i32
  }
}

</mosaic_0001>

<llo_original>
// kernel: tpu_custom_call.1
$region0: #{tpu_custom_call.1}
  #allocation0 [shape = 'u32[]', space=smem, size = 0x4, offset = 0x4, fixed_abs, tag = 'smem constant byte address 0x4 - core index']
  #allocation1 [shape = 'u32[144,128]{1,0:T(1,128)}', space=vmem, size = 0x12000, scoped, tag = 'internal scratch']
  %s0 = inlined_call_operand.hbm [shape: f32[10,128], index: 0, kind: input, shape index: {}]
  %s1 = inlined_call_operand.hbm [shape: f32[2,8,32], index: 1, kind: input, shape index: {}]
  %s2 = inlined_call_operand.hbm [shape: bf16[32,32], index: 2, kind: input, shape index: {}]
  %s3 = inlined_call_operand.hbm [shape: bf16[32,32], index: 3, kind: input, shape index: {}]
  %s4 = inlined_call_operand.hbm [shape: bf16[32,32], index: 4, kind: input, shape index: {}]
  %s5 = inlined_call_operand.hbm [shape: bf16[2,4,8,8], index: 5, kind: output, shape index: {0}]
  %s6 = inlined_call_operand.hbm [shape: bf16[2,4,8,8], index: 6, kind: output, shape index: {1}]
  %s7 = inlined_call_operand.hbm [shape: bf16[2,4,8,8], index: 7, kind: output, shape index: {2}]
  %8 = xla_tuple %s5, %s6, %s7
  %s9 = sld [smem:[#allocation0]]
  $region89: #{tpu_custom_call.1} parent=0
    _
  %s11 = ssub.s32 1, %s9
  %s12 = scalar_select 0, %s11, %s9
  $region1: #{tpu_custom_call.1} parent=0
    #allocation2 [shape = 'u8[8192]{0}', space=vmem, size = 0x2000, scoped, tag = 'input window, operand 0, single buffered']
    #allocation3 [shape = 's32[2]{0}', space=sflag, size = 0x8, scoped, tag = 'scoped memory for tpu_custom_call.1']
    #allocation4 [shape = 's32[2]{0}', space=sflag, size = 0x8, scoped, tag = 'scoped memory for tpu_custom_call.1']
    #allocation5 [shape = 'u8[8192]{0}', space=vmem, size = 0x2000, scoped, tag = 'input window, operand 1']
    #allocation6 [shape = 's32[2]{0}', space=sflag, size = 0x8, scoped, tag = 'scoped memory for tpu_custom_call.1']
    #allocation7 [shape = 'u8[8192]{0}', space=vmem, size = 0x2000, scoped, tag = 'input window, operand 2, single buffered']
    #allocation8 [shape = 'u8[8192]{0}', space=vmem, size = 0x2000, scoped, tag = 'input window, operand 3, single buffered']
    #allocation9 [shape = 's32[1]{0}', space=sflag, size = 0x4, scoped, tag = 'scoped memory for tpu_custom_call.1']
    #allocation10 [shape = 'u8[8192]{0}', space=vmem, size = 0x2000, scoped, tag = 'input window, operand 4, single buffered']
    #allocation11 [shape = 'u8[16384]{0}', space=vmem, size = 0x4000, scoped, tag = 'output window, operand 0']
    #allocation12 [shape = 'u8[16384]{0}', space=vmem, size = 0x4000, scoped, tag = 'output window, operand 1']
    #allocation13 [shape = 's32[2]{0}', space=sflag, size = 0x8, scoped, tag = 'scoped memory for tpu_custom_call.1']
    #allocation14 [shape = 'u8[16384]{0}', space=vmem, size = 0x4000, scoped, tag = 'output window, operand 2']
    %13 = vsyncpa [#allocation3], 0
    %14 = vsyncpa [#allocation6], 0
    %s15 = scalar_lea.sflag [#allocation6], 1
    %16 = vsyncpa %s15, 0
    %17 = vsyncpa [#allocation9], 0
    %18 = vsyncpa [#allocation4], 0
    %s19 = scalar_lea.sflag [#allocation4], 1
    %20 = vsyncpa %s19, 0
    %21 = vsyncpa [#allocation13], 0
    %s22 = scalar_lea.sflag [#allocation13], 1
    %23 = vsyncpa %s22, 0
    loop: start=0, step=1, limit=4
    $region2: #{tpu_custom_call.1} parent=1 // loop_pre_header
      _
    $region3: #{tpu_custom_call.1} parent=1 // loop_header
      %s25 = sphi 0, %s29
      %p26 = scmp.ge.s32.totalorder %s25, 4
      %s32 = sphi 0, %s44
      %s33 = sphi 0, %s40
      %s34 = sphi 0, %s32
      %s35 = sphi 0, %s33
      %s36 = sphi 0, %s34
      %s37 = sphi 0, %s35
      %s45 = sphi 0, %s45
      %s47 = sphi 0, %s45
      %s48 = sphi 0, %s47
      %s62 = sphi 0, %s48
      %s70 = sphi 0, %s72
      %s73 = sphi 0, %s70
      %s74 = sphi 0, %s73
      %s90 = sphi 0, %s74
      %s94 = sphi 0, %s94
      %s96 = sphi 0, %s94
      %s97 = sphi 0, %s96
      %s111 = sphi 0, %s97
      %s115 = sphi 0, %s115
      %s117 = sphi 0, %s115
      %s118 = sphi 0, %s117
      %s132 = sphi 0, %s118
      %s136 = sphi 0, %s136
      %s138 = sphi 0, %s136
      %s139 = sphi 0, %s138
      %s153 = sphi 0, %s139
      %s161 = sphi 0, %s163
      %s164 = sphi 0, %s161
      %s165 = sphi 0, %s164
      %s181 = sphi 0, %s165
      %s189 = sphi 0, %s191
      %s192 = sphi 0, %s189
      %s193 = sphi 0, %s192
      %s209 = sphi 0, %s193
      %s217 = sphi 0, %s219
      %s220 = sphi 0, %s217
      %s221 = sphi 0, %s220
      %s237 = sphi 0, %s221
    $region4: #{tpu_custom_call.1} parent=1 // loop_header_branch
      %28 = sbr.rel (%p26) target = $region8
    $region5: #{tpu_custom_call.1} parent=1 // loop_body
      %s30 = ssub.s32 %s25, 1
      %s31 = ssub.s32 %s25, 2
      %s38 = sadd.s32 1, %s33
      %p39 = scmp.ge.s32.totalorder %s38, 1
      %s40 = scalar_select %p39, 0, %s38
      %s41 = sadd.s32 1, %s32
      %s42 = scalar_select %p39, %s41, %s32
      %p43 = scmp.ge.s32.totalorder %s42, 2
      %s44 = scalar_select %p43, 0, %s42
      %s46 = sadd.s32 %s45, 1
      %p49 = scmp.eq.s32.totalorder %s25, 1
      %p50 = scmp.ne.s32.totalorder %s45, %s47
      %p51 = scmp.eq.s32.totalorder %s25, 0
      %p52 = por %p50, %p51
      %p53 = scmp.ne.s32.totalorder %s45, %s47
      %p54 = scmp.eq.s32.totalorder %s30, 1
      %p55 = por %p53, %p54
      %p56 = scmp.ne.s32.totalorder %s47, %s48
      %p57 = scmp.eq.s32.totalorder %s30, 0
      %p58 = por %p56, %p57
      %p59 = scmp.ne.s32.totalorder %s47, %s48
      %p60 = scmp.eq.s32.totalorder %s31, 1
      %p61 = por %p59, %p60
      %p63 = scmp.ne.s32.totalorder %s48, %s62
      %p64 = scmp.eq.s32.totalorder %s31, 0
      %p65 = por %p63, %p64
      %s66 = ssub.s32 %s32, %s44
      %s67 = ssub.s32 %s33, %s40
      %s68 = sor.u32 %s66, %s67
      %p69 = scmp.eq.s32.totalorder %s68, 0
      %s71 = sadd.s32 %s70, 1
      %s72 = scalar_select %p69, %s70, %s71
      %p75 = pneg %p69
      %p76 = scmp.eq.s32.totalorder %s25, 1
      %p77 = por %p75, %p76
      %p78 = scmp.ne.s32.totalorder %s70, %s73
      %p79 = scmp.eq.s32.totalorder %s25, 0
      %p80 = por %p78, %p79
      %p81 = scmp.ne.s32.totalorder %s70, %s73
      %p82 = scmp.eq.s32.totalorder %s30, 1
      %p83 = por %p81, %p82
      %p84 = scmp.ne.s32.totalorder %s73, %s74
      %p85 = scmp.eq.s32.totalorder %s30, 0
      %p86 = por %p84, %p85
      %p87 = scmp.ne.s32.totalorder %s73, %s74
      %p88 = scmp.eq.s32.totalorder %s31, 1
      %p89 = por %p87, %p88
      %p91 = scmp.ne.s32.totalorder %s74, %s90
      %p92 = scmp.eq.s32.totalorder %s31, 0
      %p93 = por %p91, %p92
      %s95 = sadd.s32 %s94, 1
      %p98 = scmp.eq.s32.totalorder %s25, 1
      %p99 = scmp.ne.s32.totalorder %s94, %s96
      %p100 = scmp.eq.s32.totalorder %s25, 0
      %p101 = por %p99, %p100
      %p102 = scmp.ne.s32.totalorder %s94, %s96
      %p103 = scmp.eq.s32.totalorder %s30, 1
      %p104 = por %p102, %p103
      %p105 = scmp.ne.s32.totalorder %s96, %s97
      %p106 = scmp.eq.s32.totalorder %s30, 0
      %p107 = por %p105, %p106
      %p108 = scmp.ne.s32.totalorder %s96, %s97
      %p109 = scmp.eq.s32.totalorder %s31, 1
      %p110 = por %p108, %p109
      %p112 = scmp.ne.s32.totalorder %s97, %s111
      %p113 = scmp.eq.s32.totalorder %s31, 0
      %p114 = por %p112, %p113
      %s116 = sadd.s32 %s115, 1
      %p119 = scmp.eq.s32.totalorder %s25, 1
      %p120 = scmp.ne.s32.totalorder %s115, %s117
      %p121 = scmp.eq.s32.totalorder %s25, 0
      %p122 = por %p120, %p121
      %p123 = scmp.ne.s32.totalorder %s115, %s117
      %p124 = scmp.eq.s32.totalorder %s30, 1
      %p125 = por %p123, %p124
      %p126 = scmp.ne.s32.totalorder %s117, %s118
      %p127 = scmp.eq.s32.totalorder %s30, 0
      %p128 = por %p126, %p127
      %p129 = scmp.ne.s32.totalorder %s117, %s118
      %p130 = scmp.eq.s32.totalorder %s31, 1
      %p131 = por %p129, %p130
      %p133 = scmp.ne.s32.totalorder %s118, %s132
      %p134 = scmp.eq.s32.totalorder %s31, 0
      %p135 = por %p133, %p134
      %s137 = sadd.s32 %s136, 1
      %p140 = scmp.eq.s32.totalorder %s25, 1
      %p141 = scmp.ne.s32.totalorder %s136, %s138
      %p142 = scmp.eq.s32.totalorder %s25, 0
      %p143 = por %p141, %p142
      %p144 = scmp.ne.s32.totalorder %s136, %s138
      %p145 = scmp.eq.s32.totalorder %s30, 1
      %p146 = por %p144, %p145
      %p147 = scmp.ne.s32.totalorder %s138, %s139
      %p148 = scmp.eq.s32.totalorder %s30, 0
      %p149 = por %p147, %p148
      %p150 = scmp.ne.s32.totalorder %s138, %s139
      %p151 = scmp.eq.s32.totalorder %s31, 1
      %p152 = por %p150, %p151
      %p154 = scmp.ne.s32.totalorder %s139, %s153
      %p155 = scmp.eq.s32.totalorder %s31, 0
      %p156 = por %p154, %p155
      %s157 = ssub.s32 %s32, %s44
      %s158 = ssub.s32 %s33, %s40
      %s159 = sor.u32 %s157, %s158
      %p160 = scmp.eq.s32.totalorder %s159, 0
      %s162 = sadd.s32 %s161, 1
      %s163 = scalar_select %p160, %s161, %s162
      %p166 = pneg %p160
      %p167 = scmp.eq.s32.totalorder %s25, 1
      %p168 = por %p166, %p167
      %p169 = scmp.ne.s32.totalorder %s161, %s164
      %p170 = scmp.eq.s32.totalorder %s25, 0
      %p171 = por %p169, %p170
      %p172 = scmp.ne.s32.totalorder %s161, %s164
      %p173 = scmp.eq.s32.totalorder %s30, 1
      %p174 = por %p172, %p173
      %p175 = scmp.ne.s32.totalorder %s164, %s165
      %p176 = scmp.eq.s32.totalorder %s30, 0
      %p177 = por %p175, %p176
      %p178 = scmp.ne.s32.totalorder %s164, %s165
      %p179 = scmp.eq.s32.totalorder %s31, 1
      %p180 = por %p178, %p179
      %p182 = scmp.ne.s32.totalorder %s165, %s181
      %p183 = scmp.eq.s32.totalorder %s31, 0
      %p184 = por %p182, %p183
      %s185 = ssub.s32 %s32, %s44
      %s186 = ssub.s32 %s33, %s40
      %s187 = sor.u32 %s185, %s186
      %p188 = scmp.eq.s32.totalorder %s187, 0
      %s190 = sadd.s32 %s189, 1
      %s191 = scalar_select %p188, %s189, %s190
      %p194 = pneg %p188
      %p195 = scmp.eq.s32.totalorder %s25, 1
      %p196 = por %p194, %p195
      %p197 = scmp.ne.s32.totalorder %s189, %s192
      %p198 = scmp.eq.s32.totalorder %s25, 0
      %p199 = por %p197, %p198
      %p200 = scmp.ne.s32.totalorder %s189, %s192
      %p201 = scmp.eq.s32.totalorder %s30, 1
      %p202 = por %p200, %p201
      %p203 = scmp.ne.s32.totalorder %s192, %s193
      %p204 = scmp.eq.s32.totalorder %s30, 0
      %p205 = por %p203, %p204
      %p206 = scmp.ne.s32.totalorder %s192, %s193
      %p207 = scmp.eq.s32.totalorder %s31, 1
      %p208 = por %p206, %p207
      %p210 = scmp.ne.s32.totalorder %s193, %s209
      %p211 = scmp.eq.s32.totalorder %s31, 0
      %p212 = por %p210, %p211
      %s213 = ssub.s32 %s32, %s44
      %s214 = ssub.s32 %s33, %s40
      %s215 = sor.u32 %s213, %s214
      %p216 = scmp.eq.s32.totalorder %s215, 0
      %s218 = sadd.s32 %s217, 1
      %s219 = scalar_select %p216, %s217, %s218
      %p222 = pneg %p216
      %p223 = scmp.eq.s32.totalorder %s25, 1
      %p224 = por %p222, %p223
      %p225 = scmp.ne.s32.totalorder %s217, %s220
      %p226 = scmp.eq.s32.totalorder %s25, 0
      %p227 = por %p225, %p226
      %p228 = scmp.ne.s32.totalorder %s217, %s220
      %p229 = scmp.eq.s32.totalorder %s30, 1
      %p230 = por %p228, %p229
      %p231 = scmp.ne.s32.totalorder %s220, %s221
      %p232 = scmp.eq.s32.totalorder %s30, 0
      %p233 = por %p231, %p232
      %p234 = scmp.ne.s32.totalorder %s220, %s221
      %p235 = scmp.eq.s32.totalorder %s31, 1
      %p236 = por %p234, %p235
      %p238 = scmp.ne.s32.totalorder %s221, %s237
      %p239 = scmp.eq.s32.totalorder %s31, 0
      %p240 = por %p238, %p239
      %p241 = scmp.le.s32.totalorder 1, %s25
      %p242 = scmp.lt.s32.totalorder %s25, 3
      %p243 = pnand %p241, %p242
      %p244 = pneg %p243
      // Predicated region
      $region9: #{tpu_custom_call.1} parent=5 // pred_check
        _
      $region10: #{tpu_custom_call.1} parent=5 // pred_check_branch
        %246 = sbr.rel (%p243) target = $region12
      $region11: #{tpu_custom_call.1} parent=5 // pred_region
        %s247 = ssub.s32 %s25, 1
        // Predicated region
        $region13: #{tpu_custom_call.1} parent=11 // pred_check
          %p248 = pneg %p58
        $region14: #{tpu_custom_call.1} parent=11 // pred_check_branch
          %250 = sbr.rel (%p248) target = $region16
        $region15: #{tpu_custom_call.1} parent=11 // pred_region
          %s252 = ssub.s32 256, 256
          %253 = vsyncadd [#allocation3], %s252
          %s254 = sshll.u32 [#allocation2], 4
          %s255 = int_to_ptr.vmem [resolvable:$true] %s254
          %260 = dma.hbm_to_vmem [thread:$0]  %s0, 256, %s255, [#allocation3], 128, 128, 8
        $region16: #{tpu_custom_call.1} parent=11 // pred_fallthru
          _
        // Predicated region
        $region17: #{tpu_custom_call.1} parent=11 // pred_check
          %p261 = pneg %p107
        $region18: #{tpu_custom_call.1} parent=11 // pred_check_branch
          %263 = sbr.rel (%p261) target = $region20
        $region19: #{tpu_custom_call.1} parent=11 // pred_region
          %s265 = ssub.s32 256, 256
          %266 = vsyncadd [#allocation6], %s265
          %s267 = sshll.u32 [#allocation7], 4
          %s268 = int_to_ptr.vmem [resolvable:$true] %s267
          %273 = dma.hbm_to_vmem [thread:$0]  %s2, 256, %s268, [#allocation6], 64, 64, 4
        $region20: #{tpu_custom_call.1} parent=11 // pred_fallthru
          _
        // Predicated region
        $region21: #{tpu_custom_call.1} parent=11 // pred_check
          %p274 = pneg %p128
        $region22: #{tpu_custom_call.1} parent=11 // pred_check_branch
          %276 = sbr.rel (%p274) target = $region24
        $region23: #{tpu_custom_call.1} parent=11 // pred_region
          %s278 = ssub.s32 256, 256
          %279 = vsyncadd [#allocation9], %s278
          %s280 = sshll.u32 [#allocation8], 4
          %s281 = int_to_ptr.vmem [resolvable:$true] %s280
          %286 = dma.hbm_to_vmem [thread:$0]  %s3, 256, %s281, [#allocation9], 64, 64, 4
        $region24: #{tpu_custom_call.1} parent=11 // pred_fallthru
          _
        // Predicated region
        $region25: #{tpu_custom_call.1} parent=11 // pred_check
          %p287 = pneg %p149
        $region26: #{tpu_custom_call.1} parent=11 // pred_check_branch
          %289 = sbr.rel (%p287) target = $region28
        $region27: #{tpu_custom_call.1} parent=11 // pred_region
          %s291 = ssub.s32 256, 256
          %292 = vsyncadd [#allocation9], %s291
          %s293 = sshll.u32 [#allocation10], 4
          %s294 = int_to_ptr.vmem [resolvable:$true] %s293
          %299 = dma.hbm_to_vmem [thread:$0]  %s4, 256, %s294, [#allocation9], 64, 64, 4
        $region28: #{tpu_custom_call.1} parent=11 // pred_fallthru
          _
      $region12: #{tpu_custom_call.1} parent=5 // pred_fallthru
        _
      %p300 = scmp.lt.s32.totalorder %s25, 2
      // Predicated region
      $region29: #{tpu_custom_call.1} parent=5 // pred_check
        %p301 = pneg %p300
      $region30: #{tpu_custom_call.1} parent=5 // pred_check_branch
        %303 = sbr.rel (%p301) target = $region32
      $region31: #{tpu_custom_call.1} parent=5 // pred_region
        // Predicated region
        $region33: #{tpu_custom_call.1} parent=31 // pred_check
          %p304 = pneg %p80
        $region34: #{tpu_custom_call.1} parent=31 // pred_check_branch
          %306 = sbr.rel (%p304) target = $region36
        $region35: #{tpu_custom_call.1} parent=31 // pred_region
          %s307 = sand.u32 %s25, 1
          %s308 = scalar_lea.sflag [#allocation6], %s307
          %s309 = sand.u32 %s70, 1
          %s310 = smul.addr %s309, 8
          %s311 = scalar_lea.vmem [#allocation5], %s310
          %s313 = ssub.s32 128, 128
          %314 = vsyncadd %s308, %s313
          %s315 = sadd.s32 %s33, %s32
          %s316 = smul.addr %s315, 128
          %s317 = scalar_lea.hbm %s1, %s316
          %s319 = sshll.u32 %s311, 4
          %s320 = int_to_ptr.vmem [resolvable:$true] %s319
          %322 = dma.hbm_to_vmem [thread:$0]  %s317, 128, %s320, %s308
        $region36: #{tpu_custom_call.1} parent=31 // pred_fallthru
          _
      $region32: #{tpu_custom_call.1} parent=5 // pred_fallthru
        _
      %p323 = scmp.le.s32.totalorder 1, %s25
      %p324 = scmp.lt.s32.totalorder %s25, 3
      %p325 = pnand %p323, %p324
      %p326 = pneg %p325
      // Predicated region
      $region37: #{tpu_custom_call.1} parent=5 // pred_check
        _
      $region38: #{tpu_custom_call.1} parent=5 // pred_check_branch
        %328 = sbr.rel (%p325) target = $region40
      $region39: #{tpu_custom_call.1} parent=5 // pred_region
        %s329 = ssub.s32 %s25, 1
        // Predicated region
        $region41: #{tpu_custom_call.1} parent=39 // pred_check
          %p330 = pneg %p58
        $region42: #{tpu_custom_call.1} parent=39 // pred_check_branch
          %332 = sbr.rel (%p330) target = $region44
        $region43: #{tpu_custom_call.1} parent=39 // pred_region
          %333 = dma.done [#allocation3], 256
        $region44: #{tpu_custom_call.1} parent=39 // pred_fallthru
          _
        %s334 = sand.u32 %s30, 1
        %s335 = scalar_lea.sflag [#allocation6], %s334
        %s336 = sand.u32 %s73, 1
        %s337 = smul.addr %s336, 8
        %s338 = scalar_lea.vmem [#allocation5], %s337
        // Predicated region
        $region45: #{tpu_custom_call.1} parent=39 // pred_check
          %p339 = pneg %p86
        $region46: #{tpu_custom_call.1} parent=39 // pred_check_branch
          %341 = sbr.rel (%p339) target = $region48
        $region47: #{tpu_custom_call.1} parent=39 // pred_region
          %342 = dma.done %s335, 128
        $region48: #{tpu_custom_call.1} parent=39 // pred_fallthru
          _
        // Predicated region
        $region49: #{tpu_custom_call.1} parent=39 // pred_check
          %p343 = pneg %p107
        $region50: #{tpu_custom_call.1} parent=39 // pred_check_branch
          %345 = sbr.rel (%p343) target = $region52
        $region51: #{tpu_custom_call.1} parent=39 // pred_region
          %346 = dma.done [#allocation6], 256
        $region52: #{tpu_custom_call.1} parent=39 // pred_fallthru
          _
        // Predicated region
        $region53: #{tpu_custom_call.1} parent=39 // pred_check
          %p347 = pneg %p128
        $region54: #{tpu_custom_call.1} parent=39 // pred_check_branch
          %349 = sbr.rel (%p347) target = $region56
        $region55: #{tpu_custom_call.1} parent=39 // pred_region
          %350 = dma.done [#allocation9], 256
        $region56: #{tpu_custom_call.1} parent=39 // pred_fallthru
          _
        // Predicated region
        $region57: #{tpu_custom_call.1} parent=39 // pred_check
          %p351 = pneg %p149
        $region58: #{tpu_custom_call.1} parent=39 // pred_check_branch
          %353 = sbr.rel (%p351) target = $region60
        $region59: #{tpu_custom_call.1} parent=39 // pred_region
          %354 = dma.done [#allocation9], 256
        $region60: #{tpu_custom_call.1} parent=39 // pred_fallthru
          _
        %p355 = pneg %p58
        %p356 = pneg %p55
        %s357 = sand.u32 %s30, 1
        %s358 = scalar_lea.sflag [#allocation6], %s357
        %s359 = sand.u32 %s73, 1
        %s360 = smul.addr %s359, 8
        %s361 = scalar_lea.vmem [#allocation5], %s360
        %p362 = pneg %p86
        %p363 = pneg %p83
        %p364 = pneg %p107
        %p365 = pneg %p104
        %p366 = pneg %p128
        %p367 = pneg %p125
        %p368 = pneg %p149
        %p369 = pneg %p146
        %p370 = pneg %p177
        %p371 = pneg %p174
        %s372 = sand.u32 %s164, 1
        %s373 = scalar_lea.sflag [#allocation4], %s372
        %s374 = sand.u32 %s164, 1
        %s375 = smul.addr %s374, 16
        %s376 = scalar_lea.vmem [#allocation11], %s375
        %p377 = pneg %p205
        %p378 = pneg %p202
        %s379 = sand.u32 %s30, 1
        %s380 = scalar_lea.sflag [#allocation13], %s379
        %s381 = sand.u32 %s192, 1
        %s382 = smul.addr %s381, 16
        %s383 = scalar_lea.vmem [#allocation12], %s382
        %p384 = pneg %p233
        %p385 = pneg %p230
        %s386 = sand.u32 %s30, 1
        %s387 = scalar_lea.sflag [#allocation13], %s386
        %s388 = sand.u32 %s220, 1
        %s389 = smul.addr %s388, 16
        %s390 = scalar_lea.vmem [#allocation14], %s389
        %v392 = vld [vmem:[%s338] sm:$0xff]
        %v393 = vld [vmem:[#allocation2] sm:$0x1]
        %v394 = vld [vmem:[#allocation2 + $0x1] sm:$0x1]
        %vm395 = vcmask 261120
        %v396 = vsel %vm395, %v392, 0.0
        %397 = vadd.xlane.f32.xlu0 %v396
        %v398 = vpop.xlane.xlu0 %397
        %v399 = vrcp.pop 32.0
        %v400 = vmul.f32 %v398, %v399
        %v401 = vsub.f32 %v392, %v400
        %v402 = vmul.f32 %v401, %v401
        %v403 = vsel %vm395, %v402, 0.0
        %404 = vadd.xlane.f32.xlu0 %v403
        %v405 = vpop.xlane.xlu0 %404
        %v406 = vmul.f32 %v405, %v399
        %v407 = vadd.f32 %v406, 1e-05
        %v408 = vrsqrt.pop %v407
        %v409 = vmul.f32 %v401, %v408
        %v410 = vlaneseq
        %v411 = vshrl.u32 %v410, 7
        %v412 = vsub.s32 0, %v411
        %v413 = vrot.slane %v393, %v412
        %v414 = vmul.f32 %v409, %v413
        %v415 = vlaneseq
        %v416 = vshrl.u32 %v415, 7
        %v417 = vsub.s32 0, %v416
        %v418 = vrot.slane %v394, %v417
        %v419 = vadd.f32 %v414, %v418
        %v420 = vpack.c.bf16 %v419, %v419
        %v421 = vld [vmem:[#allocation7] sm:$0xf]
        %v422 = vld [vmem:[#allocation7 + $0x4] sm:$0xf]
        %v423 = vld [vmem:[#allocation7 + $0x8] sm:$0xf]
        %v424 = vld [vmem:[#allocation7 + $0xc] sm:$0xf]
        %v425 = vld [vmem:[#allocation2 + $0x2] sm:$0x1]
        %v426 = vlaneseq
        %v427 = vshrl.u32 %v426, 7
        %v428 = vsub.s32 0, %v427
        %v429 = vrot.slane %v425, %v428
        %v434 = vunpack.c.l.b16 %v421
        %v435 = vunpack.c.l.b16 %v422
        %v436 = vunpack.c.l.b16 %v423
        %v437 = vunpack.c.l.b16 %v424
        %v438 = vpack.c.b16 %v435, %v434
        %v439 = vpack.c.b16 %v437, %v436
        %v443 = vsel %vm395, %v420, 0
        %445 = vmatprep.subr.bf16.mxu0 0
        %446 = vmatpush1.bf16.msra.mxu0 %v438
        %447 = vmatprep.subr.bf16.mxu0 0
        %448 = vmatpush1.bf16.msra.mxu0 %v439
        %449 = vmatprep.subr.bf16.mxu0 0
        %450 = vmatpush1.bf16.msra.mxu0 0
        %451 = vmatprep.subr.bf16.mxu0 0
        %452 = vmatpush1.bf16.msra.mxu0 0
        %453 = vmatprep.subr.bf16.mxu0 0
        %454 = vmatpush1.bf16.msra.mxu0 0
        %455 = vmatprep.subr.bf16.mxu0 0
        %456 = vmatpush1.bf16.msra.mxu0 0
        %457 = vmatprep.subr.bf16.mxu0 0
        %458 = vmatpush1.bf16.msra.mxu0 0
        %459 = vmatprep.subr.bf16.mxu0 0
        %460 = vmatpush1.bf16.msra.mxu0 0
        %461 = vmatprep.subr.bf16.mxu0 0
        %462 = vmatpush1.bf16.msra.mxu0 0
        %463 = vmatprep.subr.bf16.mxu0 0
        %464 = vmatpush1.bf16.msra.mxu0 0
        %465 = vmatprep.subr.bf16.mxu0 0
        %466 = vmatpush1.bf16.msra.mxu0 0
        %467 = vmatprep.subr.bf16.mxu0 0
        %468 = vmatpush1.bf16.msra.mxu0 0
        %469 = vmatprep.subr.bf16.mxu0 0
        %470 = vmatpush1.bf16.msra.mxu0 0
        %471 = vmatprep.subr.bf16.mxu0 0
        %472 = vmatpush1.bf16.msra.mxu0 0
        %473 = vmatprep.subr.bf16.mxu0 0
        %474 = vmatpush1.bf16.msra.mxu0 0
        %475 = vmatprep.subr.bf16.mxu0 0
        %476 = vmatpush1.bf16.msra.mxu0 0
        %477 = vmatprep.mubr.bf16.mxu0 0
        %478 = vmatmul.mubr.bf16.gmra.mrb[0].mxu0 %v443
        %v479 = vpop.f32.mrb[0].mxu0
        %v480 = vadd.f32 %v429, %v479
        %v481 = vpop.f32.mrb[0].mxu0
        %v482 = vpop.f32.mrb[0].mxu0
        %v483 = vpop.f32.mrb[0].mxu0
        %484 = vdwg.mxu0
        %v485 = vmul.f32 %v480, 0.17677669
        %v486 = vld [vmem:[#allocation8] sm:$0xf]
        %v487 = vld [vmem:[#allocation8 + $0x4] sm:$0xf]
        %v488 = vld [vmem:[#allocation8 + $0x8] sm:$0xf]
        %v489 = vld [vmem:[#allocation8 + $0xc] sm:$0xf]
        %v490 = vld [vmem:[#allocation2 + $0x3] sm:$0x1]
        %v491 = vlaneseq
        %v492 = vshrl.u32 %v491, 7
        %v493 = vsub.s32 0, %v492
        %v494 = vrot.slane %v490, %v493
        %v499 = vunpack.c.l.b16 %v486
        %v500 = vunpack.c.l.b16 %v487
        %v501 = vunpack.c.l.b16 %v488
        %v502 = vunpack.c.l.b16 %v489
        %v503 = vpack.c.b16 %v500, %v499
        %v504 = vpack.c.b16 %v502, %v501
        %507 = vmatprep.subr.bf16.mxu0 0
        %508 = vmatpush1.bf16.msra.mxu0 %v503
        %509 = vmatprep.subr.bf16.mxu0 0
        %510 = vmatpush1.bf16.msra.mxu0 %v504
        %511 = vmatprep.subr.bf16.mxu0 0
        %512 = vmatpush1.bf16.msra.mxu0 0
        %513 = vmatprep.subr.bf16.mxu0 0
        %514 = vmatpush1.bf16.msra.mxu0 0
        %515 = vmatprep.subr.bf16.mxu0 0
        %516 = vmatpush1.bf16.msra.mxu0 0
        %517 = vmatprep.subr.bf16.mxu0 0
        %518 = vmatpush1.bf16.msra.mxu0 0
        %519 = vmatprep.subr.bf16.mxu0 0
        %520 = vmatpush1.bf16.msra.mxu0 0
        %521 = vmatprep.subr.bf16.mxu0 0
        %522 = vmatpush1.bf16.msra.mxu0 0
        %523 = vmatprep.subr.bf16.mxu0 0
        %524 = vmatpush1.bf16.msra.mxu0 0
        %525 = vmatprep.subr.bf16.mxu0 0
        %526 = vmatpush1.bf16.msra.mxu0 0
        %527 = vmatprep.subr.bf16.mxu0 0
        %528 = vmatpush1.bf16.msra.mxu0 0
        %529 = vmatprep.subr.bf16.mxu0 0
        %530 = vmatpush1.bf16.msra.mxu0 0
        %531 = vmatprep.subr.bf16.mxu0 0
        %532 = vmatpush1.bf16.msra.mxu0 0
        %533 = vmatprep.subr.bf16.mxu0 0
        %534 = vmatpush1.bf16.msra.mxu0 0
        %535 = vmatprep.subr.bf16.mxu0 0
        %536 = vmatpush1.bf16.msra.mxu0 0
        %537 = vmatprep.subr.bf16.mxu0 0
        %538 = vmatpush1.bf16.msra.mxu0 0
        %539 = vmatprep.mubr.bf16.mxu0 0
        %540 = vmatmul.mubr.bf16.gmra.mrb[0].mxu0 %v443
        %v541 = vpop.f32.mrb[0].mxu0
        %v542 = vadd.f32 %v494, %v541
        %v543 = vpop.f32.mrb[0].mxu0
        %v544 = vpop.f32.mrb[0].mxu0
        %v545 = vpop.f32.mrb[0].mxu0
        %546 = vdwg.mxu0
        %v547 = vld [vmem:[#allocation10] sm:$0xf]
        %v548 = vld [vmem:[#allocation10 + $0x4] sm:$0xf]
        %v549 = vld [vmem:[#allocation10 + $0x8] sm:$0xf]
        %v550 = vld [vmem:[#allocation10 + $0xc] sm:$0xf]
        %v551 = vld [vmem:[#allocation2 + $0x4] sm:$0x1]
        %v552 = vlaneseq
        %v553 = vshrl.u32 %v552, 7
        %v554 = vsub.s32 0, %v553
        %v555 = vrot.slane %v551, %v554
        %v560 = vunpack.c.l.b16 %v547
        %v561 = vunpack.c.l.b16 %v548
        %v562 = vunpack.c.l.b16 %v549
        %v563 = vunpack.c.l.b16 %v550
        %v564 = vpack.c.b16 %v561, %v560
        %v565 = vpack.c.b16 %v563, %v562
        %568 = vmatprep.subr.bf16.mxu0 0
        %569 = vmatpush1.bf16.msra.mxu0 %v564
        %570 = vmatprep.subr.bf16.mxu0 0
        %571 = vmatpush1.bf16.msra.mxu0 %v565
        %572 = vmatprep.subr.bf16.mxu0 0
        %573 = vmatpush1.bf16.msra.mxu0 0
        %574 = vmatprep.subr.bf16.mxu0 0
        %575 = vmatpush1.bf16.msra.mxu0 0
        %576 = vmatprep.subr.bf16.mxu0 0
        %577 = vmatpush1.bf16.msra.mxu0 0
        %578 = vmatprep.subr.bf16.mxu0 0
        %579 = vmatpush1.bf16.msra.mxu0 0
        %580 = vmatprep.subr.bf16.mxu0 0
        %581 = vmatpush1.bf16.msra.mxu0 0
        %582 = vmatprep.subr.bf16.mxu0 0
        %583 = vmatpush1.bf16.msra.mxu0 0
        %584 = vmatprep.subr.bf16.mxu0 0
        %585 = vmatpush1.bf16.msra.mxu0 0
        %586 = vmatprep.subr.bf16.mxu0 0
        %587 = vmatpush1.bf16.msra.mxu0 0
        %588 = vmatprep.subr.bf16.mxu0 0
        %589 = vmatpush1.bf16.msra.mxu0 0
        %590 = vmatprep.subr.bf16.mxu0 0
        %591 = vmatpush1.bf16.msra.mxu0 0
        %592 = vmatprep.subr.bf16.mxu0 0
        %593 = vmatpush1.bf16.msra.mxu0 0
        %594 = vmatprep.subr.bf16.mxu0 0
        %595 = vmatpush1.bf16.msra.mxu0 0
        %596 = vmatprep.subr.bf16.mxu0 0
        %597 = vmatpush1.bf16.msra.mxu0 0
        %598 = vmatprep.subr.bf16.mxu0 0
        %599 = vmatpush1.bf16.msra.mxu0 0
        %600 = vmatprep.mubr.bf16.mxu0 0
        %601 = vmatmul.mubr.bf16.gmra.mrb[0].mxu0 %v443
        %v602 = vpop.f32.mrb[0].mxu0
        %v603 = vadd.f32 %v555, %v602
        %v604 = vpop.f32.mrb[0].mxu0
        %v605 = vpop.f32.mrb[0].mxu0
        %v606 = vpop.f32.mrb[0].mxu0
        %607 = vdwg.mxu0
        %608 = vxpose.xlu0.b32.start [1/16] %v542, 128
        %609 = vxpose.xlu0.b32.cont [2/16] 0.0, 128
        %610 = vxpose.xlu0.b32.cont [3/16] 0.0, 128
        %611 = vxpose.xlu0.b32.cont [4/16] 0.0, 128
        %612 = vxpose.xlu0.b32.cont [5/16] 0.0, 128
        %613 = vxpose.xlu0.b32.cont [6/16] 0.0, 128
        %614 = vxpose.xlu0.b32.cont [7/16] 0.0, 128
        %615 = vxpose.xlu0.b32.cont [8/16] 0.0, 128
        %616 = vxpose.xlu0.b32.cont [9/16] 0.0, 128
        %617 = vxpose.xlu0.b32.cont [10/16] 0.0, 128
        %618 = vxpose.xlu0.b32.cont [11/16] 0.0, 128
        %619 = vxpose.xlu0.b32.cont [12/16] 0.0, 128
        %620 = vxpose.xlu0.b32.cont [13/16] 0.0, 128
        %621 = vxpose.xlu0.b32.cont [14/16] 0.0, 128
        %622 = vxpose.xlu0.b32.cont [15/16] 0.0, 128
        %623 = vxpose.xlu0.b32.end [16/16] 0.0, 128
        %v624 = vpop.trf.xlu0
        %v625 = vpop.trf.xlu0
        %v626 = vpop.trf.xlu0
        %v627 = vpop.trf.xlu0
        %v628 = vpop.trf.xlu0
        %v629 = vpop.trf.xlu0
        %v630 = vpop.trf.xlu0
        %v631 = vpop.trf.xlu0
        %v632 = vpop.trf.xlu0
        %v633 = vpop.trf.xlu0
        %v634 = vpop.trf.xlu0
        %v635 = vpop.trf.xlu0
        %v636 = vpop.trf.xlu0
        %v637 = vpop.trf.xlu0
        %v638 = vpop.trf.xlu0
        %v639 = vpop.trf.xlu0
        %v640 = vpack.c.bf16 %v624, %v624
        %v641 = vpack.c.bf16 %v625, %v625
        %v642 = vpack.c.bf16 %v626, %v626
        %v643 = vpack.c.bf16 %v627, %v627
        %vm644 = vcmask 60416
        %645 = vst.msk [vmem:[%s383] sm:$0xf] %vm644, %v640
        %646 = vst.msk [vmem:[%s383 + $0x4] sm:$0xf] %vm644, %v641
        %647 = vst.msk [vmem:[%s383 + $0x8] sm:$0xf] %vm644, %v642
        %648 = vst.msk [vmem:[%s383 + $0xc] sm:$0xf] %vm644, %v643
        %649 = vxpose.xlu0.b32.start [1/16] %v485, 128
        %650 = vxpose.xlu0.b32.cont [2/16] 0.0, 128
        %651 = vxpose.xlu0.b32.cont [3/16] 0.0, 128
        %652 = vxpose.xlu0.b32.cont [4/16] 0.0, 128
        %653 = vxpose.xlu0.b32.cont [5/16] 0.0, 128
        %654 = vxpose.xlu0.b32.cont [6/16] 0.0, 128
        %655 = vxpose.xlu0.b32.cont [7/16] 0.0, 128
        %656 = vxpose.xlu0.b32.cont [8/16] 0.0, 128
        %657 = vxpose.xlu0.b32.cont [9/16] 0.0, 128
        %658 = vxpose.xlu0.b32.cont [10/16] 0.0, 128
        %659 = vxpose.xlu0.b32.cont [11/16] 0.0, 128
        %660 = vxpose.xlu0.b32.cont [12/16] 0.0, 128
        %661 = vxpose.xlu0.b32.cont [13/16] 0.0, 128
        %662 = vxpose.xlu0.b32.cont [14/16] 0.0, 128
        %663 = vxpose.xlu0.b32.cont [15/16] 0.0, 128
        %664 = vxpose.xlu0.b32.end [16/16] 0.0, 128
        %v665 = vpop.trf.xlu0
        %v666 = vpop.trf.xlu0
        %v667 = vpop.trf.xlu0
        %v668 = vpop.trf.xlu0
        %v669 = vpop.trf.xlu0
        %v670 = vpop.trf.xlu0
        %v671 = vpop.trf.xlu0
        %v672 = vpop.trf.xlu0
        %v673 = vpop.trf.xlu0
        %v674 = vpop.trf.xlu0
        %v675 = vpop.trf.xlu0
        %v676 = vpop.trf.xlu0
        %v677 = vpop.trf.xlu0
        %v678 = vpop.trf.xlu0
        %v679 = vpop.trf.xlu0
        %v680 = vpop.trf.xlu0
        %681 = vxpose.xlu0.b32.start [1/16] %v665, 128
        %682 = vxpose.xlu0.b32.cont [2/16] 0.0, 128
        %683 = vxpose.xlu0.b32.cont [3/16] 0.0, 128
        %684 = vxpose.xlu0.b32.cont [4/16] 0.0, 128
        %685 = vxpose.xlu0.b32.cont [5/16] 0.0, 128
        %686 = vxpose.xlu0.b32.cont [6/16] 0.0, 128
        %687 = vxpose.xlu0.b32.cont [7/16] 0.0, 128
        %688 = vxpose.xlu0.b32.cont [8/16] 0.0, 128
        %689 = vxpose.xlu0.b32.cont [9/16] 0.0, 128
        %690 = vxpose.xlu0.b32.cont [10/16] 0.0, 128
        %691 = vxpose.xlu0.b32.cont [11/16] 0.0, 128
        %692 = vxpose.xlu0.b32.cont [12/16] 0.0, 128
        %693 = vxpose.xlu0.b32.cont [13/16] 0.0, 128
        %694 = vxpose.xlu0.b32.cont [14/16] 0.0, 128
        %695 = vxpose.xlu0.b32.cont [15/16] 0.0, 128
        %696 = vxpose.xlu0.b32.end [16/16] 0.0, 128
        %v697 = vpop.trf.xlu0
        %v698 = vpop.trf.xlu0
        %v699 = vpop.trf.xlu0
        %v700 = vpop.trf.xlu0
        %v701 = vpop.trf.xlu0
        %v702 = vpop.trf.xlu0
        %v703 = vpop.trf.xlu0
        %v704 = vpop.trf.xlu0
        %v705 = vpop.trf.xlu0
        %v706 = vpop.trf.xlu0
        %v707 = vpop.trf.xlu0
        %v708 = vpop.trf.xlu0
        %v709 = vpop.trf.xlu0
        %v710 = vpop.trf.xlu0
        %v711 = vpop.trf.xlu0
        %v712 = vpop.trf.xlu0
        %713 = vxpose.xlu0.b32.start [1/16] %v666, 128
        %714 = vxpose.xlu0.b32.cont [2/16] 0.0, 128
        %715 = vxpose.xlu0.b32.cont [3/16] 0.0, 128
        %716 = vxpose.xlu0.b32.cont [4/16] 0.0, 128
        %717 = vxpose.xlu0.b32.cont [5/16] 0.0, 128
        %718 = vxpose.xlu0.b32.cont [6/16] 0.0, 128
        %719 = vxpose.xlu0.b32.cont [7/16] 0.0, 128
        %720 = vxpose.xlu0.b32.cont [8/16] 0.0, 128
        %721 = vxpose.xlu0.b32.cont [9/16] 0.0, 128
        %722 = vxpose.xlu0.b32.cont [10/16] 0.0, 128
        %723 = vxpose.xlu0.b32.cont [11/16] 0.0, 128
        %724 = vxpose.xlu0.b32.cont [12/16] 0.0, 128
        %725 = vxpose.xlu0.b32.cont [13/16] 0.0, 128
        %726 = vxpose.xlu0.b32.cont [14/16] 0.0, 128
        %727 = vxpose.xlu0.b32.cont [15/16] 0.0, 128
        %728 = vxpose.xlu0.b32.end [16/16] 0.0, 128
        %v729 = vpop.trf.xlu0
        %v730 = vpop.trf.xlu0
        %v731 = vpop.trf.xlu0
        %v732 = vpop.trf.xlu0
        %v733 = vpop.trf.xlu0
        %v734 = vpop.trf.xlu0
        %v735 = vpop.trf.xlu0
        %v736 = vpop.trf.xlu0
        %v737 = vpop.trf.xlu0
        %v738 = vpop.trf.xlu0
        %v739 = vpop.trf.xlu0
        %v740 = vpop.trf.xlu0
        %v741 = vpop.trf.xlu0
        %v742 = vpop.trf.xlu0
        %v743 = vpop.trf.xlu0
        %v744 = vpop.trf.xlu0
        %745 = vxpose.xlu0.b32.start [1/16] %v667, 128
        %746 = vxpose.xlu0.b32.cont [2/16] 0.0, 128
        %747 = vxpose.xlu0.b32.cont [3/16] 0.0, 128
        %748 = vxpose.xlu0.b32.cont [4/16] 0.0, 128
        %749 = vxpose.xlu0.b32.cont [5/16] 0.0, 128
        %750 = vxpose.xlu0.b32.cont [6/16] 0.0, 128
        %751 = vxpose.xlu0.b32.cont [7/16] 0.0, 128
        %752 = vxpose.xlu0.b32.cont [8/16] 0.0, 128
        %753 = vxpose.xlu0.b32.cont [9/16] 0.0, 128
        %754 = vxpose.xlu0.b32.cont [10/16] 0.0, 128
        %755 = vxpose.xlu0.b32.cont [11/16] 0.0, 128
        %756 = vxpose.xlu0.b32.cont [12/16] 0.0, 128
        %757 = vxpose.xlu0.b32.cont [13/16] 0.0, 128
        %758 = vxpose.xlu0.b32.cont [14/16] 0.0, 128
        %759 = vxpose.xlu0.b32.cont [15/16] 0.0, 128
        %760 = vxpose.xlu0.b32.end [16/16] 0.0, 128
        %v761 = vpop.trf.xlu0
        %v762 = vpop.trf.xlu0
        %v763 = vpop.trf.xlu0
        %v764 = vpop.trf.xlu0
        %v765 = vpop.trf.xlu0
        %v766 = vpop.trf.xlu0
        %v767 = vpop.trf.xlu0
        %v768 = vpop.trf.xlu0
        %v769 = vpop.trf.xlu0
        %v770 = vpop.trf.xlu0
        %v771 = vpop.trf.xlu0
        %v772 = vpop.trf.xlu0
        %v773 = vpop.trf.xlu0
        %v774 = vpop.trf.xlu0
        %v775 = vpop.trf.xlu0
        %v776 = vpop.trf.xlu0
        %777 = vxpose.xlu0.b32.start [1/16] %v668, 128
        %778 = vxpose.xlu0.b32.cont [2/16] 0.0, 128
        %779 = vxpose.xlu0.b32.cont [3/16] 0.0, 128
        %780 = vxpose.xlu0.b32.cont [4/16] 0.0, 128
        %781 = vxpose.xlu0.b32.cont [5/16] 0.0, 128
        %782 = vxpose.xlu0.b32.cont [6/16] 0.0, 128
        %783 = vxpose.xlu0.b32.cont [7/16] 0.0, 128
        %784 = vxpose.xlu0.b32.cont [8/16] 0.0, 128
        %785 = vxpose.xlu0.b32.cont [9/16] 0.0, 128
        %786 = vxpose.xlu0.b32.cont [10/16] 0.0, 128
        %787 = vxpose.xlu0.b32.cont [11/16] 0.0, 128
        %788 = vxpose.xlu0.b32.cont [12/16] 0.0, 128
        %789 = vxpose.xlu0.b32.cont [13/16] 0.0, 128
        %790 = vxpose.xlu0.b32.cont [14/16] 0.0, 128
        %791 = vxpose.xlu0.b32.cont [15/16] 0.0, 128
        %792 = vxpose.xlu0.b32.end [16/16] 0.0, 128
        %v793 = vpop.trf.xlu0
        %v794 = vpop.trf.xlu0
        %v795 = vpop.trf.xlu0
        %v796 = vpop.trf.xlu0
        %v797 = vpop.trf.xlu0
        %v798 = vpop.trf.xlu0
        %v799 = vpop.trf.xlu0
        %v800 = vpop.trf.xlu0
        %v801 = vpop.trf.xlu0
        %v802 = vpop.trf.xlu0
        %v803 = vpop.trf.xlu0
        %v804 = vpop.trf.xlu0
        %v805 = vpop.trf.xlu0
        %v806 = vpop.trf.xlu0
        %v807 = vpop.trf.xlu0
        %v808 = vpop.trf.xlu0
        %v809 = vpack.c.bf16 %v697, %v697
        %v810 = vpack.c.bf16 %v729, %v729
        %v811 = vpack.c.bf16 %v761, %v761
        %v812 = vpack.c.bf16 %v793, %v793
        %813 = vst.msk [vmem:[%s376] sm:$0xf] %vm644, %v809
        %814 = vst.msk [vmem:[%s376 + $0x4] sm:$0xf] %vm644, %v810
        %815 = vst.msk [vmem:[%s376 + $0x8] sm:$0xf] %vm644, %v811
        %816 = vst.msk [vmem:[%s376 + $0xc] sm:$0xf] %vm644, %v812
        %817 = vxpose.xlu0.b32.start [1/16] %v603, 128
        %818 = vxpose.xlu0.b32.cont [2/16] 0.0, 128
        %819 = vxpose.xlu0.b32.cont [3/16] 0.0, 128
        %820 = vxpose.xlu0.b32.cont [4/16] 0.0, 128
        %821 = vxpose.xlu0.b32.cont [5/16] 0.0, 128
        %822 = vxpose.xlu0.b32.cont [6/16] 0.0, 128
        %823 = vxpose.xlu0.b32.cont [7/16] 0.0, 128
        %824 = vxpose.xlu0.b32.cont [8/16] 0.0, 128
        %825 = vxpose.xlu0.b32.cont [9/16] 0.0, 128
        %826 = vxpose.xlu0.b32.cont [10/16] 0.0, 128
        %827 = vxpose.xlu0.b32.cont [11/16] 0.0, 128
        %828 = vxpose.xlu0.b32.cont [12/16] 0.0, 128
        %829 = vxpose.xlu0.b32.cont [13/16] 0.0, 128
        %830 = vxpose.xlu0.b32.cont [14/16] 0.0, 128
        %831 = vxpose.xlu0.b32.cont [15/16] 0.0, 128
        %832 = vxpose.xlu0.b32.end [16/16] 0.0, 128
        %v833 = vpop.trf.xlu0
        %v834 = vpop.trf.xlu0
        %v835 = vpop.trf.xlu0
        %v836 = vpop.trf.xlu0
        %v837 = vpop.trf.xlu0
        %v838 = vpop.trf.xlu0
        %v839 = vpop.trf.xlu0
        %v840 = vpop.trf.xlu0
        %v841 = vpop.trf.xlu0
        %v842 = vpop.trf.xlu0
        %v843 = vpop.trf.xlu0
        %v844 = vpop.trf.xlu0
        %v845 = vpop.trf.xlu0
        %v846 = vpop.trf.xlu0
        %v847 = vpop.trf.xlu0
        %v848 = vpop.trf.xlu0
        %849 = vxpose.xlu0.b32.start [1/16] %v833, 128
        %850 = vxpose.xlu0.b32.cont [2/16] 0.0, 128
        %851 = vxpose.xlu0.b32.cont [3/16] 0.0, 128
        %852 = vxpose.xlu0.b32.cont [4/16] 0.0, 128
        %853 = vxpose.xlu0.b32.cont [5/16] 0.0, 128
        %854 = vxpose.xlu0.b32.cont [6/16] 0.0, 128
        %855 = vxpose.xlu0.b32.cont [7/16] 0.0, 128
        %856 = vxpose.xlu0.b32.cont [8/16] 0.0, 128
        %857 = vxpose.xlu0.b32.cont [9/16] 0.0, 128
        %858 = vxpose.xlu0.b32.cont [10/16] 0.0, 128
        %859 = vxpose.xlu0.b32.cont [11/16] 0.0, 128
        %860 = vxpose.xlu0.b32.cont [12/16] 0.0, 128
        %861 = vxpose.xlu0.b32.cont [13/16] 0.0, 128
        %862 = vxpose.xlu0.b32.cont [14/16] 0.0, 128
        %863 = vxpose.xlu0.b32.cont [15/16] 0.0, 128
        %864 = vxpose.xlu0.b32.end [16/16] 0.0, 128
        %v865 = vpop.trf.xlu0
        %v866 = vpop.trf.xlu0
        %v867 = vpop.trf.xlu0
        %v868 = vpop.trf.xlu0
        %v869 = vpop.trf.xlu0
        %v870 = vpop.trf.xlu0
        %v871 = vpop.trf.xlu0
        %v872 = vpop.trf.xlu0
        %v873 = vpop.trf.xlu0
        %v874 = vpop.trf.xlu0
        %v875 = vpop.trf.xlu0
        %v876 = vpop.trf.xlu0
        %v877 = vpop.trf.xlu0
        %v878 = vpop.trf.xlu0
        %v879 = vpop.trf.xlu0
        %v880 = vpop.trf.xlu0
        %881 = vxpose.xlu0.b32.start [1/16] %v834, 128
        %882 = vxpose.xlu0.b32.cont [2/16] 0.0, 128
        %883 = vxpose.xlu0.b32.cont [3/16] 0.0, 128
        %884 = vxpose.xlu0.b32.cont [4/16] 0.0, 128
        %885 = vxpose.xlu0.b32.cont [5/16] 0.0, 128
        %886 = vxpose.xlu0.b32.cont [6/16] 0.0, 128
        %887 = vxpose.xlu0.b32.cont [7/16] 0.0, 128
        %888 = vxpose.xlu0.b32.cont [8/16] 0.0, 128
        %889 = vxpose.xlu0.b32.cont [9/16] 0.0, 128
        %890 = vxpose.xlu0.b32.cont [10/16] 0.0, 128
        %891 = vxpose.xlu0.b32.cont [11/16] 0.0, 128
        %892 = vxpose.xlu0.b32.cont [12/16] 0.0, 128
        %893 = vxpose.xlu0.b32.cont [13/16] 0.0, 128
        %894 = vxpose.xlu0.b32.cont [14/16] 0.0, 128
        %895 = vxpose.xlu0.b32.cont [15/16] 0.0, 128
        %896 = vxpose.xlu0.b32.end [16/16] 0.0, 128
        %v897 = vpop.trf.xlu0
        %v898 = vpop.trf.xlu0
        %v899 = vpop.trf.xlu0
        %v900 = vpop.trf.xlu0
        %v901 = vpop.trf.xlu0
        %v902 = vpop.trf.xlu0
        %v903 = vpop.trf.xlu0
        %v904 = vpop.trf.xlu0
        %v905 = vpop.trf.xlu0
        %v906 = vpop.trf.xlu0
        %v907 = vpop.trf.xlu0
        %v908 = vpop.trf.xlu0
        %v909 = vpop.trf.xlu0
        %v910 = vpop.trf.xlu0
        %v911 = vpop.trf.xlu0
        %v912 = vpop.trf.xlu0
        %913 = vxpose.xlu0.b32.start [1/16] %v835, 128
        %914 = vxpose.xlu0.b32.cont [2/16] 0.0, 128
        %915 = vxpose.xlu0.b32.cont [3/16] 0.0, 128
        %916 = vxpose.xlu0.b32.cont [4/16] 0.0, 128
        %917 = vxpose.xlu0.b32.cont [5/16] 0.0, 128
        %918 = vxpose.xlu0.b32.cont [6/16] 0.0, 128
        %919 = vxpose.xlu0.b32.cont [7/16] 0.0, 128
        %920 = vxpose.xlu0.b32.cont [8/16] 0.0, 128
        %921 = vxpose.xlu0.b32.cont [9/16] 0.0, 128
        %922 = vxpose.xlu0.b32.cont [10/16] 0.0, 128
        %923 = vxpose.xlu0.b32.cont [11/16] 0.0, 128
        %924 = vxpose.xlu0.b32.cont [12/16] 0.0, 128
        %925 = vxpose.xlu0.b32.cont [13/16] 0.0, 128
        %926 = vxpose.xlu0.b32.cont [14/16] 0.0, 128
        %927 = vxpose.xlu0.b32.cont [15/16] 0.0, 128
        %928 = vxpose.xlu0.b32.end [16/16] 0.0, 128
        %v929 = vpop.trf.xlu0
        %v930 = vpop.trf.xlu0
        %v931 = vpop.trf.xlu0
        %v932 = vpop.trf.xlu0
        %v933 = vpop.trf.xlu0
        %v934 = vpop.trf.xlu0
        %v935 = vpop.trf.xlu0
        %v936 = vpop.trf.xlu0
        %v937 = vpop.trf.xlu0
        %v938 = vpop.trf.xlu0
        %v939 = vpop.trf.xlu0
        %v940 = vpop.trf.xlu0
        %v941 = vpop.trf.xlu0
        %v942 = vpop.trf.xlu0
        %v943 = vpop.trf.xlu0
        %v944 = vpop.trf.xlu0
        %945 = vxpose.xlu0.b32.start [1/16] %v836, 128
        %946 = vxpose.xlu0.b32.cont [2/16] 0.0, 128
        %947 = vxpose.xlu0.b32.cont [3/16] 0.0, 128
        %948 = vxpose.xlu0.b32.cont [4/16] 0.0, 128
        %949 = vxpose.xlu0.b32.cont [5/16] 0.0, 128
        %950 = vxpose.xlu0.b32.cont [6/16] 0.0, 128
        %951 = vxpose.xlu0.b32.cont [7/16] 0.0, 128
        %952 = vxpose.xlu0.b32.cont [8/16] 0.0, 128
        %953 = vxpose.xlu0.b32.cont [9/16] 0.0, 128
        %954 = vxpose.xlu0.b32.cont [10/16] 0.0, 128
        %955 = vxpose.xlu0.b32.cont [11/16] 0.0, 128
        %956 = vxpose.xlu0.b32.cont [12/16] 0.0, 128
        %957 = vxpose.xlu0.b32.cont [13/16] 0.0, 128
        %958 = vxpose.xlu0.b32.cont [14/16] 0.0, 128
        %959 = vxpose.xlu0.b32.cont [15/16] 0.0, 128
        %960 = vxpose.xlu0.b32.end [16/16] 0.0, 128
        %v961 = vpop.trf.xlu0
        %v962 = vpop.trf.xlu0
        %v963 = vpop.trf.xlu0
        %v964 = vpop.trf.xlu0
        %v965 = vpop.trf.xlu0
        %v966 = vpop.trf.xlu0
        %v967 = vpop.trf.xlu0
        %v968 = vpop.trf.xlu0
        %v969 = vpop.trf.xlu0
        %v970 = vpop.trf.xlu0
        %v971 = vpop.trf.xlu0
        %v972 = vpop.trf.xlu0
        %v973 = vpop.trf.xlu0
        %v974 = vpop.trf.xlu0
        %v975 = vpop.trf.xlu0
        %v976 = vpop.trf.xlu0
        %v977 = vpack.c.bf16 %v865, %v865
        %v978 = vpack.c.bf16 %v897, %v897
        %v979 = vpack.c.bf16 %v929, %v929
        %v980 = vpack.c.bf16 %v961, %v961
        %981 = vst.msk [vmem:[%s390] sm:$0xf] %vm644, %v977
        %982 = vst.msk [vmem:[%s390 + $0x4] sm:$0xf] %vm644, %v978
        %983 = vst.msk [vmem:[%s390 + $0x8] sm:$0xf] %vm644, %v979
        %984 = vst.msk [vmem:[%s390 + $0xc] sm:$0xf] %vm644, %v980
        %s985 = sand.u32 %s164, 1
        %s986 = scalar_lea.sflag [#allocation4], %s985
        %s987 = sand.u32 %s164, 1
        %s988 = smul.addr %s987, 16
        %s989 = scalar_lea.vmem [#allocation11], %s988
        %s990 = sand.u32 %s30, 1
        %s991 = scalar_lea.sflag [#allocation13], %s990
        %s992 = sand.u32 %s192, 1
        %s993 = smul.addr %s992, 16
        %s994 = scalar_lea.vmem [#allocation12], %s993
        %s995 = sand.u32 %s30, 1
        %s996 = scalar_lea.sflag [#allocation13], %s995
        %s997 = sand.u32 %s220, 1
        %s998 = smul.addr %s997, 16
        %s999 = scalar_lea.vmem [#allocation14], %s998
        // Predicated region
        $region61: #{tpu_custom_call.1} parent=39 // pred_check
          %p1000 = pneg %p174
        $region62: #{tpu_custom_call.1} parent=39 // pred_check_branch
          %1002 = sbr.rel (%p1000) target = $region64
        $region63: #{tpu_custom_call.1} parent=39 // pred_region
          %s1004 = ssub.s32 256, 256
          %1005 = vsyncadd %s986, %s1004
          %s1006 = smul.addr %s34, 4
          %s1007 = sadd.s32 %s35, %s1006
          %s1008 = smul.addr %s1007, 64
          %s1009 = scalar_lea.hbm %s5, %s1008
          %s1010 = sshll.u32 %s989, 4
          %s1011 = int_to_ptr.vmem [resolvable:$true] %s1010
          %1016 = dma.vmem_to_hbm [thread:$0]  %s1011, 256, %s1009, %s986, 64, 64, 4
        $region64: #{tpu_custom_call.1} parent=39 // pred_fallthru
          _
        // Predicated region
        $region65: #{tpu_custom_call.1} parent=39 // pred_check
          %p1017 = pneg %p202
        $region66: #{tpu_custom_call.1} parent=39 // pred_check_branch
          %1019 = sbr.rel (%p1017) target = $region68
        $region67: #{tpu_custom_call.1} parent=39 // pred_region
          %s1021 = ssub.s32 256, 256
          %1022 = vsyncadd %s991, %s1021
          %s1023 = smul.addr %s34, 4
          %s1024 = sadd.s32 %s35, %s1023
          %s1025 = smul.addr %s1024, 64
          %s1026 = scalar_lea.hbm %s6, %s1025
          %s1027 = sshll.u32 %s994, 4
          %s1028 = int_to_ptr.vmem [resolvable:$true] %s1027
          %1033 = dma.vmem_to_hbm [thread:$0]  %s1028, 256, %s1026, %s991, 64, 64, 4
        $region68: #{tpu_custom_call.1} parent=39 // pred_fallthru
          _
        // Predicated region
        $region69: #{tpu_custom_call.1} parent=39 // pred_check
          %p1034 = pneg %p230
        $region70: #{tpu_custom_call.1} parent=39 // pred_check_branch
          %1036 = sbr.rel (%p1034) target = $region72
        $region71: #{tpu_custom_call.1} parent=39 // pred_region
          %s1038 = ssub.s32 256, 256
          %1039 = vsyncadd %s996, %s1038
          %s1040 = smul.addr %s34, 4
          %s1041 = sadd.s32 %s35, %s1040
          %s1042 = smul.addr %s1041, 64
          %s1043 = scalar_lea.hbm %s7, %s1042
          %s1044 = sshll.u32 %s999, 4
          %s1045 = int_to_ptr.vmem [resolvable:$true] %s1044
          %1050 = dma.vmem_to_hbm [thread:$0]  %s1045, 256, %s1043, %s996, 64, 64, 4
        $region72: #{tpu_custom_call.1} parent=39 // pred_fallthru
          _
      $region40: #{tpu_custom_call.1} parent=5 // pred_fallthru
        _
      %p1051 = scmp.le.s32.totalorder 2, %s25
      // Predicated region
      $region73: #{tpu_custom_call.1} parent=5 // pred_check
        %p1052 = pneg %p1051
      $region74: #{tpu_custom_call.1} parent=5 // pred_check_branch
        %1054 = sbr.rel (%p1052) target = $region76
      $region75: #{tpu_custom_call.1} parent=5 // pred_region
        %s1055 = ssub.s32 %s25, 2
        // Predicated region
        $region77: #{tpu_custom_call.1} parent=75 // pred_check
          %p1056 = pneg %p180
        $region78: #{tpu_custom_call.1} parent=75 // pred_check_branch
          %1058 = sbr.rel (%p1056) target = $region80
        $region79: #{tpu_custom_call.1} parent=75 // pred_region
          %s1059 = sand.u32 %s165, 1
          %s1060 = scalar_lea.sflag [#allocation4], %s1059
          %s1061 = sand.u32 %s165, 1
          %s1062 = smul.addr %s1061, 16
          %s1063 = scalar_lea.vmem [#allocation11], %s1062
          %1064 = dma.done %s1060, 256
        $region80: #{tpu_custom_call.1} parent=75 // pred_fallthru
          _
        // Predicated region
        $region81: #{tpu_custom_call.1} parent=75 // pred_check
          %p1065 = pneg %p208
        $region82: #{tpu_custom_call.1} parent=75 // pred_check_branch
          %1067 = sbr.rel (%p1065) target = $region84
        $region83: #{tpu_custom_call.1} parent=75 // pred_region
          %s1068 = sand.u32 %s31, 1
          %s1069 = scalar_lea.sflag [#allocation13], %s1068
          %s1070 = sand.u32 %s193, 1
          %s1071 = smul.addr %s1070, 16
          %s1072 = scalar_lea.vmem [#allocation12], %s1071
          %1073 = dma.done %s1069, 256
        $region84: #{tpu_custom_call.1} parent=75 // pred_fallthru
          _
        // Predicated region
        $region85: #{tpu_custom_call.1} parent=75 // pred_check
          %p1074 = pneg %p236
        $region86: #{tpu_custom_call.1} parent=75 // pred_check_branch
          %1076 = sbr.rel (%p1074) target = $region88
        $region87: #{tpu_custom_call.1} parent=75 // pred_region
          %s1077 = sand.u32 %s31, 1
          %s1078 = scalar_lea.sflag [#allocation13], %s1077
          %s1079 = sand.u32 %s221, 1
          %s1080 = smul.addr %s1079, 16
          %s1081 = scalar_lea.vmem [#allocation14], %s1080
          %1082 = dma.done %s1078, 256
        $region88: #{tpu_custom_call.1} parent=75 // pred_fallthru
          _
      $region76: #{tpu_custom_call.1} parent=5 // pred_fallthru
        _
    $region6: #{tpu_custom_call.1} parent=1 // loop_footer
      %s29 = sadd.s32 1, %s25
    $region7: #{tpu_custom_call.1} parent=1 // loop_footer_branch
      %24 = sbr.rel target = $region3
    $region8: #{tpu_custom_call.1} parent=1 // loop_exit
      _
    %1083 = vsyncpa [#allocation3], 1
    %s1084 = scalar_lea.sflag [#allocation3], 1
    %1085 = vsyncpa %s1084, 1
    %1086 = vsyncpa [#allocation6], 1
    %s1087 = scalar_lea.sflag [#allocation6], 1
    %1088 = vsyncpa %s1087, 1
    %1089 = vsyncpa [#allocation9], 1
    %1090 = vsyncpa [#allocation4], 1
    %s1091 = scalar_lea.sflag [#allocation4], 1
    %1092 = vsyncpa %s1091, 1
    %1093 = vsyncpa [#allocation13], 1
    %s1094 = scalar_lea.sflag [#allocation13], 1
    %1095 = vsyncpa %s1094, 1

</llo_original>
